<compile_context>
chip_gen: v5e
topology: v5e:2x2
jax: 0.10.0
libtpu: 0.0.40
codegen_flags: <defaults>
</compile_context>

<pallas_src>
import math

import jax
import jax.numpy as jnp
from jax.experimental import pallas as pl
from jax.experimental.pallas import tpu as pltpu


def _round_up(x, m):
    return (x + m - 1) // m * m


def _hgnn_conv_kernel(x_ref, w_ref, b_ref, g_ref, out_ref, acc_ref):
    k = pl.program_id(2)

    @pl.when(k == 0)
    def _():
        acc_ref[...] = jnp.zeros_like(acc_ref)

    # Tiny first matmul for this reduction tile: XW_k = x[k] @ W + b  (f32).
    xw = jnp.dot(x_ref[...], w_ref[...], preferred_element_type=jnp.float32)
    xw = xw + b_ref[...]  # (tk, tn) + (1, tn)

    # Dominant matmul: accumulate G[i, k] @ XW_k in f32 (MXU fed bf16).
    acc_ref[...] += jnp.dot(
        g_ref[...], xw.astype(g_ref.dtype), preferred_element_type=jnp.float32
    )

    @pl.when(k == pl.num_programs(2) - 1)
    def _():
        out_ref[...] = acc_ref[...].astype(out_ref.dtype)


def hgnn_conv(x, weight, bias, G, *, tm=128, tn=128, tk=128,
              compute_dtype=jnp.bfloat16):
    """x: (N, in_ft), weight: (in_ft, out_ft), bias: (out_ft,), G: (N, N)."""
    N, in_ft = x.shape
    out_ft = weight.shape[1]
    out_dtype = x.dtype

    # Pad everything to lane/tile-dense sizes (zero padding keeps semantics:
    # padded W/bias columns are 0, padded G columns are 0, so no leakage).
    Np = _round_up(N, math.lcm(tm, tk))
    Fp = _round_up(in_ft, 128)
    Op = _round_up(out_ft, max(tn, 128))

    cd = compute_dtype
    x_p = jnp.zeros((Np, Fp), cd).at[:N, :in_ft].set(x.astype(cd))
    w_p = jnp.zeros((Fp, Op), cd).at[:in_ft, :out_ft].set(weight.astype(cd))
    b_p = jnp.zeros((1, Op), jnp.float32).at[0, :out_ft].set(
        bias.astype(jnp.float32))
    g_p = jnp.zeros((Np, Np), cd).at[:N, :N].set(G.astype(cd))

    grid = (Np // tm, Op // tn, Np // tk)

    itemsize = jnp.dtype(cd).itemsize
    flops = int(2 * N * in_ft * out_ft + 2 * N * N * out_ft)
    bytes_accessed = int(
        x_p.size * itemsize + w_p.size * itemsize + g_p.size * itemsize
        + b_p.size * 4 + Np * Op * jnp.dtype(out_dtype).itemsize)

    out_p = pl.pallas_call(
        _hgnn_conv_kernel,
        out_shape=jax.ShapeDtypeStruct((Np, Op), out_dtype),
        grid_spec=pltpu.PrefetchScalarGridSpec(
            num_scalar_prefetch=0,
            grid=grid,
            in_specs=[
                # x rows follow the reduction axis k.
                pl.BlockSpec((tk, Fp), lambda i, j, k: (k, 0)),
                # W / bias: constant over i, k -> stay resident in VMEM.
                pl.BlockSpec((Fp, tn), lambda i, j, k: (0, j)),
                pl.BlockSpec((1, tn), lambda i, j, k: (0, j)),
                # G tile for (output-row i, reduction k).
                pl.BlockSpec((tm, tk), lambda i, j, k: (i, k)),
            ],
            out_specs=pl.BlockSpec((tm, tn), lambda i, j, k: (i, j)),
            scratch_shapes=[pltpu.VMEM((tm, tn), jnp.float32)],
        ),
        compiler_params=pltpu.CompilerParams(
            dimension_semantics=("parallel", "parallel", "arbitrary"),
            vmem_limit_bytes=64 * 1024 * 1024,
        ),
        cost_estimate=pl.CostEstimate(
            flops=flops, transcendentals=0, bytes_accessed=bytes_accessed),
    )(x_p, w_p, b_p, g_p)

    return out_p[:N, :out_ft]


def hgnn_conv_ref(x, weight, bias, G):
    return G @ (x @ weight + bias[None, :])


if __name__ == "__main__":
    # Small but non-128-aligned shapes: exercises padding + a 3x1x3 grid.
    N, in_ft, out_ft = 300, 48, 96

    key = jax.random.PRNGKey(0)
    kx, kg, kw, kb = jax.random.split(key, 4)

    x = jax.random.normal(kx, (N, in_ft), dtype=jnp.float32)
    G = jax.random.normal(kg, (N, N), dtype=jnp.float32)

    # Deterministic parameter init mirroring reset_parameters():
    # uniform(-stdv, stdv) with stdv = 1/sqrt(out_ft).
    stdv = 1.0 / math.sqrt(out_ft)
    weight = jax.random.uniform(kw, (in_ft, out_ft), jnp.float32, -stdv, stdv)
    bias = jax.random.uniform(kb, (out_ft,), jnp.float32, -stdv, stdv)

    out = jax.block_until_ready(hgnn_conv(x, weight, bias, G))
    ref = hgnn_conv_ref(x, weight, bias, G)

    assert out.shape == (N, out_ft)
    # bf16 MXU inputs with f32 accumulation: compare with a relative metric.
    rel_err = float(jnp.max(jnp.abs(out - ref)) / (jnp.max(jnp.abs(ref)) + 1e-6))
    assert rel_err < 2e-2, rel_err
    print("KERNEL_OK")
</pallas_src>

<mosaic_0001>
module attributes {stable_mosaic.version = 11 : i64} {
  func.func @_hgnn_conv_kernel(%arg0: i32, %arg1: i32, %arg2: i32, %arg3: memref<128x128xbf16, #tpu.memory_space<vmem>>, %arg4: memref<128x128xbf16, #tpu.memory_space<vmem>>, %arg5: memref<1x128xf32, #tpu.memory_space<vmem>>, %arg6: memref<128x128xbf16, #tpu.memory_space<vmem>>, %arg7: memref<128x128xf32, #tpu.memory_space<vmem>>, %arg8: memref<128x128xf32, #tpu.memory_space<vmem>>) attributes {dimension_semantics = [#tpu.dimension_semantics<parallel>, #tpu.dimension_semantics<parallel>, #tpu.dimension_semantics<arbitrary>], iteration_bounds = array<i64: 3, 1, 3>, scalar_prefetch = 0 : i64, scratch_operands = 1 : i64, tpu.core_type = #tpu.core_type<tc>, window_params = [{transform_indices = @transform_0, window_bounds = array<i64: 128, 128>}, {transform_indices = @transform_1, window_bounds = array<i64: 128, 128>}, {transform_indices = @transform_2, window_bounds = array<i64: 1, 128>}, {transform_indices = @transform_3, window_bounds = array<i64: 128, 128>}, {transform_indices = @transform_4, window_bounds = array<i64: 128, 128>}]} {
    %c0_i32 = arith.constant 0 : i32
    %0 = arith.cmpi eq, %arg2, %c0_i32 : i32
    %1 = arith.extui %0 : i1 to i32
    %c0_i32_0 = arith.constant 0 : i32
    %2 = arith.cmpi ne, %1, %c0_i32_0 : i32
    scf.if %2 {
      %cst_14 = arith.constant 0.000000e+00 : f32
      %18 = vector.broadcast %cst_14 : f32 to vector<128x128xf32>
      %c0_15 = arith.constant 0 : index
      %c0_16 = arith.constant 0 : index
      %19 = vector.load %arg8[%c0_15, %c0_16] : memref<128x128xf32, #tpu.memory_space<vmem>>, vector<128x128xf32>
      tpu.vector_store %arg8[%c0_15, %c0_16], %18 {strides = array<i32>} : memref<128x128xf32, #tpu.memory_space<vmem>>, vector<128x128xf32>,
    } else {
    }
    %c0 = arith.constant 0 : index
    %c0_1 = arith.constant 0 : index
    %3 = vector.load %arg3[%c0, %c0_1] : memref<128x128xbf16, #tpu.memory_space<vmem>>, vector<128x128xbf16>
    %c0_2 = arith.constant 0 : index
    %c0_3 = arith.constant 0 : index
    %4 = vector.load %arg4[%c0_2, %c0_3] : memref<128x128xbf16, #tpu.memory_space<vmem>>, vector<128x128xbf16>
    %cst = arith.constant dense<0.000000e+00> : vector<128x128xf32>
    %5 = tpu.matmul %3, %4, %cst {dimension_numbers = #tpu.dot_dimension_numbers<[1], [0], [0], [1], [0, 0, 1, 1], [], []>} : vector<128x128xbf16>, vector<128x128xbf16>, vector<128x128xf32> -> vector<128x128xf32>
    %c0_4 = arith.constant 0 : index
    %c0_5 = arith.constant 0 : index
    %6 = vector.load %arg5[%c0_4, %c0_5] : memref<1x128xf32, #tpu.memory_space<vmem>>, vector<1x128xf32>
    %7 = vector.broadcast %6 : vector<1x128xf32> to vector<128x128xf32>
    %8 = arith.addf %5, %7 : vector<128x128xf32>
    %c0_6 = arith.constant 0 : index
    %c0_7 = arith.constant 0 : index
    %9 = vector.load %arg8[%c0_6, %c0_7] : memref<128x128xf32, #tpu.memory_space<vmem>>, vector<128x128xf32>
    %c0_8 = arith.constant 0 : index
    %c0_9 = arith.constant 0 : index
    %10 = vector.load %arg6[%c0_8, %c0_9] : memref<128x128xbf16, #tpu.memory_space<vmem>>, vector<128x128xbf16>
    %11 = arith.truncf %8 : vector<128x128xf32> to vector<128x128xbf16>
    %cst_10 = arith.constant dense<0.000000e+00> : vector<128x128xf32>
    %12 = tpu.matmul %10, %11, %cst_10 {dimension_numbers = #tpu.dot_dimension_numbers<[1], [0], [0], [1], [0, 0, 1, 1], [], []>} : vector<128x128xbf16>, vector<128x128xbf16>, vector<128x128xf32> -> vector<128x128xf32>
    %13 = arith.addf %9, %12 : vector<128x128xf32>
    %c0_11 = arith.constant 0 : index
    %c0_12 = arith.constant 0 : index
    %14 = vector.load %arg8[%c0_11, %c0_12] : memref<128x128xf32, #tpu.memory_space<vmem>>, vector<128x128xf32>
    tpu.vector_store %arg8[%c0_11, %c0_12], %13 {strides = array<i32>} : memref<128x128xf32, #tpu.memory_space<vmem>>, vector<128x128xf32>,
    %c2_i32 = arith.constant 2 : i32
    %15 = arith.cmpi eq, %arg2, %c2_i32 : i32
    %16 = arith.extui %15 : i1 to i32
    %c0_i32_13 = arith.constant 0 : i32
    %17 = arith.cmpi ne, %16, %c0_i32_13 : i32
    scf.if %17 {
      %c0_14 = arith.constant 0 : index
      %c0_15 = arith.constant 0 : index
      %18 = vector.load %arg8[%c0_14, %c0_15] : memref<128x128xf32, #tpu.memory_space<vmem>>, vector<128x128xf32>
      %c0_16 = arith.constant 0 : index
      %c0_17 = arith.constant 0 : index
      %19 = vector.load %arg7[%c0_16, %c0_17] : memref<128x128xf32, #tpu.memory_space<vmem>>, vector<128x128xf32>
      tpu.vector_store %arg7[%c0_16, %c0_17], %18 {strides = array<i32>} : memref<128x128xf32, #tpu.memory_space<vmem>>, vector<128x128xf32>,
    } else {
    }
    return
  }
  func.func @transform_0(%arg0: i32, %arg1: i32, %arg2: i32) -> (i32, i32) {
    %c0_i32 = arith.constant 0 : i32
    %c0_i32_0 = arith.constant 0 : i32
    return %arg2, %c0_i32 : i32, i32
  }
  func.func @transform_1(%arg0: i32, %arg1: i32, %arg2: i32) -> (i32, i32) {
    %c0_i32 = arith.constant 0 : i32
    %c0_i32_0 = arith.constant 0 : i32
    return %c0_i32, %arg1 : i32, i32
  }
  func.func @transform_2(%arg0: i32, %arg1: i32, %arg2: i32) -> (i32, i32) {
    %c0_i32 = arith.constant 0 : i32
    %c0_i32_0 = arith.constant 0 : i32
    return %c0_i32, %arg1 : i32, i32
  }
  func.func @transform_3(%arg0: i32, %arg1: i32, %arg2: i32) -> (i32, i32) {
    %c0_i32 = arith.constant 0 : i32
    return %arg0, %arg2 : i32, i32
  }
  func.func @transform_4(%arg0: i32, %arg1: i32, %arg2: i32) -> (i32, i32) {
    %c0_i32 = arith.constant 0 : i32
    return %arg0, %arg1 : i32, i32
  }
}

</mosaic_0001>

<llo_original>
// kernel: tpu_custom_call.1
$region0: #{tpu_custom_call.1}
  #allocation0 [shape = 'u32[]', space=smem, size = 0x4, offset = 0x4, fixed_abs, tag = 'smem constant byte address 0x4 - core index']
  #allocation1 [shape = 'u32[72,128]{1,0:T(1,128)}', space=vmem, size = 0x9000, scoped, tag = 'internal scratch']
  #allocation2 [shape = 'f32[128,128]{1,0:T(8,128)}', space=vmem, size = 0x10000, scoped, tag = 'scratch operand']
  %s0 = inlined_call_operand.hbm [shape: bf16[384,128], index: 0, kind: input, shape index: {}]
  %s1 = inlined_call_operand.hbm [shape: bf16[128,128], index: 1, kind: input, shape index: {}]
  %s2 = inlined_call_operand.vmem [shape: f32[1,128], index: 2, kind: input, shape index: {}]
  %s3 = inlined_call_operand.hbm [shape: bf16[384,384], index: 3, kind: input, shape index: {}]
  %s4 = inlined_call_operand.hbm [shape: f32[384,128], index: 4, kind: output, shape index: {}]
  %s5 = sld [smem:[#allocation0]]
  $region69: #{tpu_custom_call.1} parent=0
    _
  %s7 = ssub.s32 1, %s5
  %s8 = scalar_select 0, %s7, %s5
  $region1: #{tpu_custom_call.1} parent=0
    #allocation3 [shape = 'u8[65536]{0}', space=vmem, size = 0x10000, scoped, tag = 'input window, operand 0']
    #allocation4 [shape = 's32[2]{0}', space=sflag, size = 0x8, scoped, tag = 'scoped memory for tpu_custom_call.1']
    #allocation5 [shape = 's32[2]{0}', space=sflag, size = 0x8, scoped, tag = 'scoped memory for tpu_custom_call.1']
    #allocation6 [shape = 'u8[32768]{0}', space=vmem, size = 0x8000, scoped, tag = 'input window, operand 1, single buffered']
    #allocation7 [shape = 's32[1]{0}', space=sflag, size = 0x4, scoped, tag = 'scoped memory for tpu_custom_call.1']
    #allocation8 [shape = 'u8[65536]{0}', space=vmem, size = 0x10000, scoped, tag = 'input window, operand 3']
    #allocation9 [shape = 'u8[131072]{0}', space=vmem, size = 0x20000, scoped, tag = 'output window, operand 0']
    %9 = vsyncpa [#allocation4], 0
    %s10 = scalar_lea.sflag [#allocation4], 1
    %11 = vsyncpa %s10, 0
    %12 = vsyncpa [#allocation7], 0
    %13 = vsyncpa [#allocation5], 0
    %s14 = scalar_lea.sflag [#allocation5], 1
    %15 = vsyncpa %s14, 0
    loop: start=0, step=1, limit=11
    $region2: #{tpu_custom_call.1} parent=1 // loop_pre_header
      _
    $region3: #{tpu_custom_call.1} parent=1 // loop_header
      %s17 = sphi 0, %s21
      %p18 = scmp.ge.s32.totalorder %s17, 11
      %s24 = sphi 0, %s43
      %s25 = sphi 0, %s39
      %s26 = sphi 0, %s35
      %s27 = sphi 0, %s24
      %s28 = sphi 0, %s25
      %s29 = sphi 0, %s26
      %s30 = sphi 0, %s27
      %s31 = sphi 0, %s28
      %s32 = sphi 0, %s29
      %s46 = sphi 0, %s48
      %s49 = sphi 0, %s46
      %s50 = sphi 0, %s49
      %s66 = sphi 0, %s50
      %s72 = sphi 0, %s74
      %s75 = sphi 0, %s72
      %s76 = sphi 0, %s75
      %s92 = sphi 0, %s76
      %s98 = sphi 0, %s100
      %s101 = sphi 0, %s98
      %s102 = sphi 0, %s101
      %s118 = sphi 0, %s102
      %s126 = sphi 0, %s128
      %s129 = sphi 0, %s126
      %s130 = sphi 0, %s129
      %s146 = sphi 0, %s130
      %s154 = sphi 0, %s156
      %s157 = sphi 0, %s154
      %s158 = sphi 0, %s157
      %s174 = sphi 0, %s158
    $region4: #{tpu_custom_call.1} parent=1 // loop_header_branch
      %20 = sbr.rel (%p18) target = $region8
    $region5: #{tpu_custom_call.1} parent=1 // loop_body
      %s22 = ssub.s32 %s17, 1
      %s23 = ssub.s32 %s17, 2
      %s33 = sadd.s32 1, %s26
      %p34 = scmp.ge.s32.totalorder %s33, 3
      %s35 = scalar_select %p34, 0, %s33
      %s36 = sadd.s32 1, %s25
      %s37 = scalar_select %p34, %s36, %s25
      %p38 = scmp.ge.s32.totalorder %s37, 1
      %s39 = scalar_select %p38, 0, %s37
      %s40 = sadd.s32 1, %s24
      %s41 = scalar_select %p38, %s40, %s24
      %p42 = scmp.ge.s32.totalorder %s41, 3
      %s43 = scalar_select %p42, 0, %s41
      %s44 = ssub.s32 %s26, %s35
      %p45 = scmp.eq.s32.totalorder %s44, 0
      %s47 = sadd.s32 %s46, 1
      %s48 = scalar_select %p45, %s46, %s47
      %p51 = pneg %p45
      %p52 = scmp.eq.s32.totalorder %s17, 8
      %p53 = por %p51, %p52
      %p54 = scmp.ne.s32.totalorder %s46, %s49
      %p55 = scmp.eq.s32.totalorder %s17, 0
      %p56 = por %p54, %p55
      %p57 = scmp.ne.s32.totalorder %s46, %s49
      %p58 = scmp.eq.s32.totalorder %s22, 8
      %p59 = por %p57, %p58
      %p60 = scmp.ne.s32.totalorder %s49, %s50
      %p61 = scmp.eq.s32.totalorder %s22, 0
      %p62 = por %p60, %p61
      %p63 = scmp.ne.s32.totalorder %s49, %s50
      %p64 = scmp.eq.s32.totalorder %s23, 8
      %p65 = por %p63, %p64
      %p67 = scmp.ne.s32.totalorder %s50, %s66
      %p68 = scmp.eq.s32.totalorder %s23, 0
      %p69 = por %p67, %p68
      %s70 = ssub.s32 %s25, %s39
      %p71 = scmp.eq.s32.totalorder %s70, 0
      %s73 = sadd.s32 %s72, 1
      %s74 = scalar_select %p71, %s72, %s73
      %p77 = pneg %p71
      %p78 = scmp.eq.s32.totalorder %s17, 8
      %p79 = por %p77, %p78
      %p80 = scmp.ne.s32.totalorder %s72, %s75
      %p81 = scmp.eq.s32.totalorder %s17, 0
      %p82 = por %p80, %p81
      %p83 = scmp.ne.s32.totalorder %s72, %s75
      %p84 = scmp.eq.s32.totalorder %s22, 8
      %p85 = por %p83, %p84
      %p86 = scmp.ne.s32.totalorder %s75, %s76
      %p87 = scmp.eq.s32.totalorder %s22, 0
      %p88 = por %p86, %p87
      %p89 = scmp.ne.s32.totalorder %s75, %s76
      %p90 = scmp.eq.s32.totalorder %s23, 8
      %p91 = por %p89, %p90
      %p93 = scmp.ne.s32.totalorder %s76, %s92
      %p94 = scmp.eq.s32.totalorder %s23, 0
      %p95 = por %p93, %p94
      %s96 = ssub.s32 %s25, %s39
      %p97 = scmp.eq.s32.totalorder %s96, 0
      %s99 = sadd.s32 %s98, 1
      %s100 = scalar_select %p97, %s98, %s99
      %p103 = pneg %p97
      %p104 = scmp.eq.s32.totalorder %s17, 8
      %p105 = por %p103, %p104
      %p106 = scmp.ne.s32.totalorder %s98, %s101
      %p107 = scmp.eq.s32.totalorder %s17, 0
      %p108 = por %p106, %p107
      %p109 = scmp.ne.s32.totalorder %s98, %s101
      %p110 = scmp.eq.s32.totalorder %s22, 8
      %p111 = por %p109, %p110
      %p112 = scmp.ne.s32.totalorder %s101, %s102
      %p113 = scmp.eq.s32.totalorder %s22, 0
      %p114 = por %p112, %p113
      %p115 = scmp.ne.s32.totalorder %s101, %s102
      %p116 = scmp.eq.s32.totalorder %s23, 8
      %p117 = por %p115, %p116
      %p119 = scmp.ne.s32.totalorder %s102, %s118
      %p120 = scmp.eq.s32.totalorder %s23, 0
      %p121 = por %p119, %p120
      %s122 = ssub.s32 %s24, %s43
      %s123 = ssub.s32 %s26, %s35
      %s124 = sor.u32 %s122, %s123
      %p125 = scmp.eq.s32.totalorder %s124, 0
      %s127 = sadd.s32 %s126, 1
      %s128 = scalar_select %p125, %s126, %s127
      %p131 = pneg %p125
      %p132 = scmp.eq.s32.totalorder %s17, 8
      %p133 = por %p131, %p132
      %p134 = scmp.ne.s32.totalorder %s126, %s129
      %p135 = scmp.eq.s32.totalorder %s17, 0
      %p136 = por %p134, %p135
      %p137 = scmp.ne.s32.totalorder %s126, %s129
      %p138 = scmp.eq.s32.totalorder %s22, 8
      %p139 = por %p137, %p138
      %p140 = scmp.ne.s32.totalorder %s129, %s130
      %p141 = scmp.eq.s32.totalorder %s22, 0
      %p142 = por %p140, %p141
      %p143 = scmp.ne.s32.totalorder %s129, %s130
      %p144 = scmp.eq.s32.totalorder %s23, 8
      %p145 = por %p143, %p144
      %p147 = scmp.ne.s32.totalorder %s130, %s146
      %p148 = scmp.eq.s32.totalorder %s23, 0
      %p149 = por %p147, %p148
      %s150 = ssub.s32 %s24, %s43
      %s151 = ssub.s32 %s25, %s39
      %s152 = sor.u32 %s150, %s151
      %p153 = scmp.eq.s32.totalorder %s152, 0
      %s155 = sadd.s32 %s154, 1
      %s156 = scalar_select %p153, %s154, %s155
      %p159 = pneg %p153
      %p160 = scmp.eq.s32.totalorder %s17, 8
      %p161 = por %p159, %p160
      %p162 = scmp.ne.s32.totalorder %s154, %s157
      %p163 = scmp.eq.s32.totalorder %s17, 0
      %p164 = por %p162, %p163
      %p165 = scmp.ne.s32.totalorder %s154, %s157
      %p166 = scmp.eq.s32.totalorder %s22, 8
      %p167 = por %p165, %p166
      %p168 = scmp.ne.s32.totalorder %s157, %s158
      %p169 = scmp.eq.s32.totalorder %s22, 0
      %p170 = por %p168, %p169
      %p171 = scmp.ne.s32.totalorder %s157, %s158
      %p172 = scmp.eq.s32.totalorder %s23, 8
      %p173 = por %p171, %p172
      %p175 = scmp.ne.s32.totalorder %s158, %s174
      %p176 = scmp.eq.s32.totalorder %s23, 0
      %p177 = por %p175, %p176
      %p178 = scmp.le.s32.totalorder 1, %s17
      %p179 = scmp.lt.s32.totalorder %s17, 10
      %p180 = pnand %p178, %p179
      %p181 = pneg %p180
      // Predicated region
      $region9: #{tpu_custom_call.1} parent=5 // pred_check
        _
      $region10: #{tpu_custom_call.1} parent=5 // pred_check_branch
        %183 = sbr.rel (%p180) target = $region12
      $region11: #{tpu_custom_call.1} parent=5 // pred_region
        %s184 = ssub.s32 %s17, 1
        // Predicated region
        $region13: #{tpu_custom_call.1} parent=11 // pred_check
          %p185 = pneg %p88
        $region14: #{tpu_custom_call.1} parent=11 // pred_check_branch
          %187 = sbr.rel (%p185) target = $region16
        $region15: #{tpu_custom_call.1} parent=11 // pred_region
          %189 = vsyncadd [#allocation7], 0
          %s190 = smul.addr %s28, 4
          %s191 = scalar_lea.hbm %s1, %s190
          %s192 = sshll.u32 %s191, 4
          %s193 = int_to_ptr.hbm [resolvable:$true] %s192
          %s194 = sshll.u32 [#allocation6], 4
          %s195 = int_to_ptr.vmem [resolvable:$true] %s194
          %200 = dma.hbm_to_vmem [thread:$0]  %s193, 1024, %s195, [#allocation7], 64, 64, 4
        $region16: #{tpu_custom_call.1} parent=11 // pred_fallthru
          _
        // Predicated region
        $region17: #{tpu_custom_call.1} parent=11 // pred_check
          %p201 = pneg %p114
        $region18: #{tpu_custom_call.1} parent=11 // pred_check_branch
          %203 = sbr.rel (%p201) target = $region20
        $region19: #{tpu_custom_call.1} parent=11 // pred_region
          %p204 = scmp.lt.s32.totalorder %s28, 0
          %s205 = scalar_select %p204, %s28, 0
          %s206 = scalar_lea.vmem %s2, %s205
        $region20: #{tpu_custom_call.1} parent=11 // pred_fallthru
          _
      $region12: #{tpu_custom_call.1} parent=5 // pred_fallthru
        _
      %p207 = scmp.lt.s32.totalorder %s17, 9
      // Predicated region
      $region21: #{tpu_custom_call.1} parent=5 // pred_check
        %p208 = pneg %p207
      $region22: #{tpu_custom_call.1} parent=5 // pred_check_branch
        %210 = sbr.rel (%p208) target = $region24
      $region23: #{tpu_custom_call.1} parent=5 // pred_region
        // Predicated region
        $region25: #{tpu_custom_call.1} parent=23 // pred_check
          %p211 = pneg %p56
        $region26: #{tpu_custom_call.1} parent=23 // pred_check_branch
          %213 = sbr.rel (%p211) target = $region28
        $region27: #{tpu_custom_call.1} parent=23 // pred_region
          %s214 = sand.u32 %s17, 1
          %s215 = scalar_lea.sflag [#allocation4], %s214
          %s216 = sand.u32 %s46, 1
          %s217 = smul.addr %s216, 64
          %s218 = scalar_lea.vmem [#allocation3], %s217
          %s219 = smul.u32 16, %s26
          %221 = vsyncadd %s215, 0
          %s222 = smul.addr %s219, 4
          %s223 = scalar_lea.hbm %s0, %s222
          %s224 = sshll.u32 %s223, 4
          %s225 = int_to_ptr.hbm [resolvable:$true] %s224
          %s226 = sshll.u32 %s218, 4
          %s227 = int_to_ptr.vmem [resolvable:$true] %s226
          %232 = dma.hbm_to_vmem [thread:$0]  %s225, 1024, %s227, %s215, 64, 64, 4
        $region28: #{tpu_custom_call.1} parent=23 // pred_fallthru
          _
        // Predicated region
        $region29: #{tpu_custom_call.1} parent=23 // pred_check
          %p233 = pneg %p136
        $region30: #{tpu_custom_call.1} parent=23 // pred_check_branch
          %235 = sbr.rel (%p233) target = $region32
        $region31: #{tpu_custom_call.1} parent=23 // pred_region
          %s236 = sand.u32 %s17, 1
          %s237 = scalar_lea.sflag [#allocation4], %s236
          %s238 = sand.u32 %s126, 1
          %s239 = smul.addr %s238, 64
          %s240 = scalar_lea.vmem [#allocation8], %s239
          %s241 = smul.u32 16, %s24
          %243 = vsyncadd %s237, 0
          %s244 = smul.addr %s241, 3
          %s245 = sadd.s32 %s26, %s244
          %s246 = smul.addr %s245, 4
          %s247 = scalar_lea.hbm %s3, %s246
          %s248 = sshll.u32 %s247, 4
          %s249 = int_to_ptr.hbm [resolvable:$true] %s248
          %s250 = sshll.u32 %s240, 4
          %s251 = int_to_ptr.vmem [resolvable:$true] %s250
          %256 = dma.hbm_to_vmem [thread:$0]  %s249, 1024, %s251, %s237, 192, 64, 4
        $region32: #{tpu_custom_call.1} parent=23 // pred_fallthru
          _
      $region24: #{tpu_custom_call.1} parent=5 // pred_fallthru
        _
      %p257 = scmp.le.s32.totalorder 1, %s17
      %p258 = scmp.lt.s32.totalorder %s17, 10
      %p259 = pnand %p257, %p258
      %p260 = pneg %p259
      // Predicated region
      $region33: #{tpu_custom_call.1} parent=5 // pred_check
        _
      $region34: #{tpu_custom_call.1} parent=5 // pred_check_branch
        %262 = sbr.rel (%p259) target = $region36
      $region35: #{tpu_custom_call.1} parent=5 // pred_region
        %s263 = ssub.s32 %s17, 1
        %s264 = sand.u32 %s22, 1
        %s265 = scalar_lea.sflag [#allocation4], %s264
        %s266 = sand.u32 %s49, 1
        %s267 = smul.addr %s266, 64
        %s268 = scalar_lea.vmem [#allocation3], %s267
        // Predicated region
        $region37: #{tpu_custom_call.1} parent=35 // pred_check
          %p269 = pneg %p62
        $region38: #{tpu_custom_call.1} parent=35 // pred_check_branch
          %271 = sbr.rel (%p269) target = $region40
        $region39: #{tpu_custom_call.1} parent=35 // pred_region
          %273 = dma.done %s265, 1024
        $region40: #{tpu_custom_call.1} parent=35 // pred_fallthru
          _
        // Predicated region
        $region41: #{tpu_custom_call.1} parent=35 // pred_check
          %p274 = pneg %p88
        $region42: #{tpu_custom_call.1} parent=35 // pred_check_branch
          %276 = sbr.rel (%p274) target = $region44
        $region43: #{tpu_custom_call.1} parent=35 // pred_region
          %278 = dma.done [#allocation7], 1024
        $region44: #{tpu_custom_call.1} parent=35 // pred_fallthru
          _
        %s279 = sand.u32 %s22, 1
        %s280 = scalar_lea.sflag [#allocation4], %s279
        %s281 = sand.u32 %s129, 1
        %s282 = smul.addr %s281, 64
        %s283 = scalar_lea.vmem [#allocation8], %s282
        // Predicated region
        $region45: #{tpu_custom_call.1} parent=35 // pred_check
          %p284 = pneg %p142
        $region46: #{tpu_custom_call.1} parent=35 // pred_check_branch
          %286 = sbr.rel (%p284) target = $region48
        $region47: #{tpu_custom_call.1} parent=35 // pred_region
          %288 = dma.done %s280, 1024
        $region48: #{tpu_custom_call.1} parent=35 // pred_fallthru
          _
        %s289 = sand.u32 %s22, 1
        %s290 = scalar_lea.sflag [#allocation4], %s289
        %s291 = sand.u32 %s49, 1
        %s292 = smul.addr %s291, 64
        %s293 = scalar_lea.vmem [#allocation3], %s292
        %p294 = pneg %p62
        %p295 = pneg %p59
        %p296 = pneg %p88
        %p297 = pneg %p85
        %p298 = scmp.lt.s32.totalorder %s28, 0
        %s299 = scalar_select %p298, %s28, 0
        %s300 = scalar_lea.vmem %s2, %s299
        %p301 = pneg %p114
        %p302 = pneg %p111
        %s303 = sand.u32 %s22, 1
        %s304 = scalar_lea.sflag [#allocation4], %s303
        %s305 = sand.u32 %s129, 1
        %s306 = smul.addr %s305, 64
        %s307 = scalar_lea.vmem [#allocation8], %s306
        %p308 = pneg %p142
        %p309 = pneg %p139
        %p310 = pneg %p170
        %p311 = pneg %p167
        %s312 = sand.u32 %s157, 1
        %s313 = scalar_lea.sflag [#allocation5], %s312
        %s314 = sand.u32 %s157, 1
        %s315 = smul.addr %s314, 128
        %s316 = scalar_lea.vmem [#allocation9], %s315
        %s317 = smul.u32 16, %s29
        %p318 = scmp.lt.s32.totalorder %s28, 0
        %s319 = scalar_select %p318, %s28, 0
        %s320 = scalar_lea.vmem %s2, %s319
        %s321 = smul.u32 16, %s27
        %s322 = smul.u32 16, %s27
        %p323 = scmp.eq.s32.totalorder %s29, 0
        // Predicated region
        $region49: #{tpu_custom_call.1} parent=35 // pred_check
          %p324 = pneg %p323
        $region50: #{tpu_custom_call.1} parent=35 // pred_check_branch
          %326 = sbr.rel (%p324) target = $region52
        $region51: #{tpu_custom_call.1} parent=35 // pred_region
          %327 = vst [vmem:[#allocation2] sm:$0xff] 0.0
          %328 = vst [vmem:[#allocation2 + $0x8] sm:$0xff] 0.0
          %329 = vst [vmem:[#allocation2 + $0x10] sm:$0xff] 0.0
          %330 = vst [vmem:[#allocation2 + $0x18] sm:$0xff] 0.0
          %331 = vst [vmem:[#allocation2 + $0x20] sm:$0xff] 0.0
          %332 = vst [vmem:[#allocation2 + $0x28] sm:$0xff] 0.0
          %333 = vst [vmem:[#allocation2 + $0x30] sm:$0xff] 0.0
          %334 = vst [vmem:[#allocation2 + $0x38] sm:$0xff] 0.0
          %335 = vst [vmem:[#allocation2 + $0x40] sm:$0xff] 0.0
          %336 = vst [vmem:[#allocation2 + $0x48] sm:$0xff] 0.0
          %337 = vst [vmem:[#allocation2 + $0x50] sm:$0xff] 0.0
          %338 = vst [vmem:[#allocation2 + $0x58] sm:$0xff] 0.0
          %339 = vst [vmem:[#allocation2 + $0x60] sm:$0xff] 0.0
          %340 = vst [vmem:[#allocation2 + $0x68] sm:$0xff] 0.0
          %341 = vst [vmem:[#allocation2 + $0x70] sm:$0xff] 0.0
          %342 = vst [vmem:[#allocation2 + $0x78] sm:$0xff] 0.0
        $region52: #{tpu_custom_call.1} parent=35 // pred_fallthru
          _
        %v343 = vld [vmem:[%s268] sm:$0xf]
        %v344 = vld [vmem:[%s268 + $0x4] sm:$0xf]
        %v345 = vld [vmem:[%s268 + $0x8] sm:$0xf]
        %v346 = vld [vmem:[%s268 + $0xc] sm:$0xf]
        %v347 = vld [vmem:[%s268 + $0x10] sm:$0xf]
        %v348 = vld [vmem:[%s268 + $0x14] sm:$0xf]
        %v349 = vld [vmem:[%s268 + $0x18] sm:$0xf]
        %v350 = vld [vmem:[%s268 + $0x1c] sm:$0xf]
        %v351 = vld [vmem:[%s268 + $0x20] sm:$0xf]
        %v352 = vld [vmem:[%s268 + $0x24] sm:$0xf]
        %v353 = vld [vmem:[%s268 + $0x28] sm:$0xf]
        %v354 = vld [vmem:[%s268 + $0x2c] sm:$0xf]
        %v355 = vld [vmem:[%s268 + $0x30] sm:$0xf]
        %v356 = vld [vmem:[%s268 + $0x34] sm:$0xf]
        %v357 = vld [vmem:[%s268 + $0x38] sm:$0xf]
        %v358 = vld [vmem:[%s268 + $0x3c] sm:$0xf]
        %v359 = vld [vmem:[#allocation6] sm:$0xf]
        %v360 = vld [vmem:[#allocation6 + $0x4] sm:$0xf]
        %v361 = vld [vmem:[#allocation6 + $0x8] sm:$0xf]
        %v362 = vld [vmem:[#allocation6 + $0xc] sm:$0xf]
        %v363 = vld [vmem:[#allocation6 + $0x10] sm:$0xf]
        %v364 = vld [vmem:[#allocation6 + $0x14] sm:$0xf]
        %v365 = vld [vmem:[#allocation6 + $0x18] sm:$0xf]
        %v366 = vld [vmem:[#allocation6 + $0x1c] sm:$0xf]
        %v367 = vld [vmem:[#allocation6 + $0x20] sm:$0xf]
        %v368 = vld [vmem:[#allocation6 + $0x24] sm:$0xf]
        %v369 = vld [vmem:[#allocation6 + $0x28] sm:$0xf]
        %v370 = vld [vmem:[#allocation6 + $0x2c] sm:$0xf]
        %v371 = vld [vmem:[#allocation6 + $0x30] sm:$0xf]
        %v372 = vld [vmem:[#allocation6 + $0x34] sm:$0xf]
        %v373 = vld [vmem:[#allocation6 + $0x38] sm:$0xf]
        %v374 = vld [vmem:[#allocation6 + $0x3c] sm:$0xf]
        %v375 = vld [vmem:[%s320] sm:$0x1]
        %v377 = vperm.slane %v375, 0
        %v395 = vunpack.c.l.b16 %v343
        %v396 = vunpack.c.l.b16 %v344
        %v397 = vunpack.c.l.b16 %v345
        %v398 = vunpack.c.l.b16 %v346
        %v399 = vunpack.c.l.b16 %v347
        %v400 = vunpack.c.l.b16 %v348
        %v401 = vunpack.c.l.b16 %v349
        %v402 = vunpack.c.l.b16 %v350
        %v403 = vunpack.c.l.b16 %v351
        %v404 = vunpack.c.l.b16 %v352
        %v405 = vunpack.c.l.b16 %v353
        %v406 = vunpack.c.l.b16 %v354
        %v407 = vunpack.c.l.b16 %v355
        %v408 = vunpack.c.l.b16 %v356
        %v409 = vunpack.c.l.b16 %v357
        %v410 = vunpack.c.l.b16 %v358
        %v411 = vpack.c.b16 %v396, %v395
        %v412 = vpack.c.b16 %v398, %v397
        %v413 = vpack.c.b16 %v400, %v399
        %v414 = vpack.c.b16 %v402, %v401
        %v415 = vpack.c.b16 %v404, %v403
        %v416 = vpack.c.b16 %v406, %v405
        %v417 = vpack.c.b16 %v408, %v407
        %v418 = vpack.c.b16 %v410, %v409
        %v443 = vunpack.c.l.b16 %v359
        %v444 = vunpack.c.l.b16 %v360
        %v445 = vunpack.c.l.b16 %v361
        %v446 = vunpack.c.l.b16 %v362
        %v447 = vunpack.c.l.b16 %v363
        %v448 = vunpack.c.l.b16 %v364
        %v449 = vunpack.c.l.b16 %v365
        %v450 = vunpack.c.l.b16 %v366
        %v451 = vunpack.c.l.b16 %v367
        %v452 = vunpack.c.l.b16 %v368
        %v453 = vunpack.c.l.b16 %v369
        %v454 = vunpack.c.l.b16 %v370
        %v455 = vunpack.c.l.b16 %v371
        %v456 = vunpack.c.l.b16 %v372
        %v457 = vunpack.c.l.b16 %v373
        %v458 = vunpack.c.l.b16 %v374
        %v459 = vpack.c.b16 %v444, %v443
        %v460 = vpack.c.b16 %v446, %v445
        %v461 = vpack.c.b16 %v448, %v447
        %v462 = vpack.c.b16 %v450, %v449
        %v463 = vpack.c.b16 %v452, %v451
        %v464 = vpack.c.b16 %v454, %v453
        %v465 = vpack.c.b16 %v456, %v455
        %v466 = vpack.c.b16 %v458, %v457
        %475 = vmatpush.bf16.msra.mxu0 %v466
        %476 = vmatpush.bf16.msra.mxu0 %v465
        %477 = vmatpush.bf16.msra.mxu0 %v464
        %478 = vmatpush.bf16.msra.mxu0 %v463
        %479 = vmatpush.bf16.msra.mxu0 %v462
        %480 = vmatpush.bf16.msra.mxu0 %v461
        %481 = vmatpush.bf16.msra.mxu0 %v460
        %482 = vmatpush.bf16.msra.mxu0 %v459
        %483 = vmatmul.bf16.gmra.mxu0 %v411
        %v484 = vpop.f32.mrf.mxu0
        %v485 = vadd.f32 %v377, %v484
        %v486 = vpop.f32.mrf.mxu0
        %v487 = vadd.f32 %v377, %v486
        %488 = vmatmul.bf16.gmra.mxu0 %v412
        %v489 = vpop.f32.mrf.mxu0
        %v490 = vadd.f32 %v377, %v489
        %v491 = vpop.f32.mrf.mxu0
        %v492 = vadd.f32 %v377, %v491
        %493 = vmatmul.bf16.gmra.mxu0 %v413
        %v494 = vpop.f32.mrf.mxu0
        %v495 = vadd.f32 %v377, %v494
        %v496 = vpop.f32.mrf.mxu0
        %v497 = vadd.f32 %v377, %v496
        %498 = vmatmul.bf16.gmra.mxu0 %v414
        %v499 = vpop.f32.mrf.mxu0
        %v500 = vadd.f32 %v377, %v499
        %v501 = vpop.f32.mrf.mxu0
        %v502 = vadd.f32 %v377, %v501
        %503 = vmatmul.bf16.gmra.mxu0 %v415
        %v504 = vpop.f32.mrf.mxu0
        %v505 = vadd.f32 %v377, %v504
        %v506 = vpop.f32.mrf.mxu0
        %v507 = vadd.f32 %v377, %v506
        %508 = vmatmul.bf16.gmra.mxu0 %v416
        %v509 = vpop.f32.mrf.mxu0
        %v510 = vadd.f32 %v377, %v509
        %v511 = vpop.f32.mrf.mxu0
        %v512 = vadd.f32 %v377, %v511
        %513 = vmatmul.bf16.gmra.mxu0 %v417
        %v514 = vpop.f32.mrf.mxu0
        %v515 = vadd.f32 %v377, %v514
        %v516 = vpop.f32.mrf.mxu0
        %v517 = vadd.f32 %v377, %v516
        %518 = vmatmul.bf16.gmra.mxu0 %v418
        %v519 = vpop.f32.mrf.mxu0
        %v520 = vadd.f32 %v377, %v519
        %v521 = vpop.f32.mrf.mxu0
        %v522 = vadd.f32 %v377, %v521
        %523 = vdwg.mxu0
        %v524 = vld [vmem:[#allocation2] sm:$0xff]
        %v525 = vld [vmem:[#allocation2 + $0x8] sm:$0xff]
        %v526 = vld [vmem:[#allocation2 + $0x10] sm:$0xff]
        %v527 = vld [vmem:[#allocation2 + $0x18] sm:$0xff]
        %v528 = vld [vmem:[#allocation2 + $0x20] sm:$0xff]
        %v529 = vld [vmem:[#allocation2 + $0x28] sm:$0xff]
        %v530 = vld [vmem:[#allocation2 + $0x30] sm:$0xff]
        %v531 = vld [vmem:[#allocation2 + $0x38] sm:$0xff]
        %v532 = vld [vmem:[#allocation2 + $0x40] sm:$0xff]
        %v533 = vld [vmem:[#allocation2 + $0x48] sm:$0xff]
        %v534 = vld [vmem:[#allocation2 + $0x50] sm:$0xff]
        %v535 = vld [vmem:[#allocation2 + $0x58] sm:$0xff]
        %v536 = vld [vmem:[#allocation2 + $0x60] sm:$0xff]
        %v537 = vld [vmem:[#allocation2 + $0x68] sm:$0xff]
        %v538 = vld [vmem:[#allocation2 + $0x70] sm:$0xff]
        %v539 = vld [vmem:[#allocation2 + $0x78] sm:$0xff]
        %v540 = vld [vmem:[%s283] sm:$0xf]
        %v541 = vld [vmem:[%s283 + $0x4] sm:$0xf]
        %v542 = vld [vmem:[%s283 + $0x8] sm:$0xf]
        %v543 = vld [vmem:[%s283 + $0xc] sm:$0xf]
        %v544 = vld [vmem:[%s283 + $0x10] sm:$0xf]
        %v545 = vld [vmem:[%s283 + $0x14] sm:$0xf]
        %v546 = vld [vmem:[%s283 + $0x18] sm:$0xf]
        %v547 = vld [vmem:[%s283 + $0x1c] sm:$0xf]
        %v548 = vld [vmem:[%s283 + $0x20] sm:$0xf]
        %v549 = vld [vmem:[%s283 + $0x24] sm:$0xf]
        %v550 = vld [vmem:[%s283 + $0x28] sm:$0xf]
        %v551 = vld [vmem:[%s283 + $0x2c] sm:$0xf]
        %v552 = vld [vmem:[%s283 + $0x30] sm:$0xf]
        %v553 = vld [vmem:[%s283 + $0x34] sm:$0xf]
        %v554 = vld [vmem:[%s283 + $0x38] sm:$0xf]
        %v555 = vld [vmem:[%s283 + $0x3c] sm:$0xf]
        %v556 = vpack.c.bf16 %v487, %v485
        %v557 = vpack.c.bf16 %v492, %v490
        %v558 = vpack.c.bf16 %v497, %v495
        %v559 = vpack.c.bf16 %v502, %v500
        %v560 = vpack.c.bf16 %v507, %v505
        %v561 = vpack.c.bf16 %v512, %v510
        %v562 = vpack.c.bf16 %v517, %v515
        %v563 = vpack.c.bf16 %v522, %v520
        %v580 = vunpack.c.l.b16 %v540
        %v581 = vunpack.c.l.b16 %v541
        %v582 = vunpack.c.l.b16 %v542
        %v583 = vunpack.c.l.b16 %v543
        %v584 = vunpack.c.l.b16 %v544
        %v585 = vunpack.c.l.b16 %v545
        %v586 = vunpack.c.l.b16 %v546
        %v587 = vunpack.c.l.b16 %v547
        %v588 = vunpack.c.l.b16 %v548
        %v589 = vunpack.c.l.b16 %v549
        %v590 = vunpack.c.l.b16 %v550
        %v591 = vunpack.c.l.b16 %v551
        %v592 = vunpack.c.l.b16 %v552
        %v593 = vunpack.c.l.b16 %v553
        %v594 = vunpack.c.l.b16 %v554
        %v595 = vunpack.c.l.b16 %v555
        %v596 = vpack.c.b16 %v581, %v580
        %v597 = vpack.c.b16 %v583, %v582
        %v598 = vpack.c.b16 %v585, %v584
        %v599 = vpack.c.b16 %v587, %v586
        %v600 = vpack.c.b16 %v589, %v588
        %v601 = vpack.c.b16 %v591, %v590
        %v602 = vpack.c.b16 %v593, %v592
        %v603 = vpack.c.b16 %v595, %v594
        %612 = vmatpush.bf16.msra.mxu0 %v563
        %613 = vmatpush.bf16.msra.mxu0 %v562
        %614 = vmatpush.bf16.msra.mxu0 %v561
        %615 = vmatpush.bf16.msra.mxu0 %v560
        %616 = vmatpush.bf16.msra.mxu0 %v559
        %617 = vmatpush.bf16.msra.mxu0 %v558
        %618 = vmatpush.bf16.msra.mxu0 %v557
        %619 = vmatpush.bf16.msra.mxu0 %v556
        %620 = vmatmul.bf16.gmra.mxu0 %v596
        %v621 = vpop.f32.mrf.mxu0
        %v622 = vadd.f32 0.0, %v621
        %v623 = vpop.f32.mrf.mxu0
        %v624 = vadd.f32 0.0, %v623
        %625 = vmatmul.bf16.gmra.mxu0 %v597
        %v626 = vpop.f32.mrf.mxu0
        %v627 = vadd.f32 0.0, %v626
        %v628 = vpop.f32.mrf.mxu0
        %v629 = vadd.f32 0.0, %v628
        %630 = vmatmul.bf16.gmra.mxu0 %v598
        %v631 = vpop.f32.mrf.mxu0
        %v632 = vadd.f32 0.0, %v631
        %v633 = vpop.f32.mrf.mxu0
        %v634 = vadd.f32 0.0, %v633
        %635 = vmatmul.bf16.gmra.mxu0 %v599
        %v636 = vpop.f32.mrf.mxu0
        %v637 = vadd.f32 0.0, %v636
        %v638 = vpop.f32.mrf.mxu0
        %v639 = vadd.f32 0.0, %v638
        %640 = vmatmul.bf16.gmra.mxu0 %v600
        %v641 = vpop.f32.mrf.mxu0
        %v642 = vadd.f32 0.0, %v641
        %v643 = vpop.f32.mrf.mxu0
        %v644 = vadd.f32 0.0, %v643
        %645 = vmatmul.bf16.gmra.mxu0 %v601
        %v646 = vpop.f32.mrf.mxu0
        %v647 = vadd.f32 0.0, %v646
        %v648 = vpop.f32.mrf.mxu0
        %v649 = vadd.f32 0.0, %v648
        %650 = vmatmul.bf16.gmra.mxu0 %v602
        %v651 = vpop.f32.mrf.mxu0
        %v652 = vadd.f32 0.0, %v651
        %v653 = vpop.f32.mrf.mxu0
        %v654 = vadd.f32 0.0, %v653
        %655 = vmatmul.bf16.gmra.mxu0 %v603
        %v656 = vpop.f32.mrf.mxu0
        %v657 = vadd.f32 0.0, %v656
        %v658 = vpop.f32.mrf.mxu0
        %v659 = vadd.f32 0.0, %v658
        %660 = vdwg.mxu0
        %v661 = vadd.f32 %v524, %v622
        %v662 = vadd.f32 %v525, %v624
        %v663 = vadd.f32 %v526, %v627
        %v664 = vadd.f32 %v527, %v629
        %v665 = vadd.f32 %v528, %v632
        %v666 = vadd.f32 %v529, %v634
        %v667 = vadd.f32 %v530, %v637
        %v668 = vadd.f32 %v531, %v639
        %v669 = vadd.f32 %v532, %v642
        %v670 = vadd.f32 %v533, %v644
        %v671 = vadd.f32 %v534, %v647
        %v672 = vadd.f32 %v535, %v649
        %v673 = vadd.f32 %v536, %v652
        %v674 = vadd.f32 %v537, %v654
        %v675 = vadd.f32 %v538, %v657
        %v676 = vadd.f32 %v539, %v659
        %677 = vst [vmem:[#allocation2] sm:$0xff] %v661
        %678 = vst [vmem:[#allocation2 + $0x8] sm:$0xff] %v662
        %679 = vst [vmem:[#allocation2 + $0x10] sm:$0xff] %v663
        %680 = vst [vmem:[#allocation2 + $0x18] sm:$0xff] %v664
        %681 = vst [vmem:[#allocation2 + $0x20] sm:$0xff] %v665
        %682 = vst [vmem:[#allocation2 + $0x28] sm:$0xff] %v666
        %683 = vst [vmem:[#allocation2 + $0x30] sm:$0xff] %v667
        %684 = vst [vmem:[#allocation2 + $0x38] sm:$0xff] %v668
        %685 = vst [vmem:[#allocation2 + $0x40] sm:$0xff] %v669
        %686 = vst [vmem:[#allocation2 + $0x48] sm:$0xff] %v670
        %687 = vst [vmem:[#allocation2 + $0x50] sm:$0xff] %v671
        %688 = vst [vmem:[#allocation2 + $0x58] sm:$0xff] %v672
        %689 = vst [vmem:[#allocation2 + $0x60] sm:$0xff] %v673
        %690 = vst [vmem:[#allocation2 + $0x68] sm:$0xff] %v674
        %691 = vst [vmem:[#allocation2 + $0x70] sm:$0xff] %v675
        %692 = vst [vmem:[#allocation2 + $0x78] sm:$0xff] %v676
        %p693 = scmp.eq.s32.totalorder %s29, 2
        // Predicated region
        $region53: #{tpu_custom_call.1} parent=35 // pred_check
          %p694 = pneg %p693
        $region54: #{tpu_custom_call.1} parent=35 // pred_check_branch
          %696 = sbr.rel (%p694) target = $region56
        $region55: #{tpu_custom_call.1} parent=35 // pred_region
          %v697 = vld [vmem:[#allocation2] sm:$0xff]
          %v698 = vld [vmem:[#allocation2 + $0x8] sm:$0xff]
          %v699 = vld [vmem:[#allocation2 + $0x10] sm:$0xff]
          %v700 = vld [vmem:[#allocation2 + $0x18] sm:$0xff]
          %v701 = vld [vmem:[#allocation2 + $0x20] sm:$0xff]
          %v702 = vld [vmem:[#allocation2 + $0x28] sm:$0xff]
          %v703 = vld [vmem:[#allocation2 + $0x30] sm:$0xff]
          %v704 = vld [vmem:[#allocation2 + $0x38] sm:$0xff]
          %v705 = vld [vmem:[#allocation2 + $0x40] sm:$0xff]
          %v706 = vld [vmem:[#allocation2 + $0x48] sm:$0xff]
          %v707 = vld [vmem:[#allocation2 + $0x50] sm:$0xff]
          %v708 = vld [vmem:[#allocation2 + $0x58] sm:$0xff]
          %v709 = vld [vmem:[#allocation2 + $0x60] sm:$0xff]
          %v710 = vld [vmem:[#allocation2 + $0x68] sm:$0xff]
          %v711 = vld [vmem:[#allocation2 + $0x70] sm:$0xff]
          %v712 = vld [vmem:[#allocation2 + $0x78] sm:$0xff]
          %713 = vst [vmem:[%s316] sm:$0xff] %v697
          %714 = vst [vmem:[%s316 + $0x8] sm:$0xff] %v698
          %715 = vst [vmem:[%s316 + $0x10] sm:$0xff] %v699
          %716 = vst [vmem:[%s316 + $0x18] sm:$0xff] %v700
          %717 = vst [vmem:[%s316 + $0x20] sm:$0xff] %v701
          %718 = vst [vmem:[%s316 + $0x28] sm:$0xff] %v702
          %719 = vst [vmem:[%s316 + $0x30] sm:$0xff] %v703
          %720 = vst [vmem:[%s316 + $0x38] sm:$0xff] %v704
          %721 = vst [vmem:[%s316 + $0x40] sm:$0xff] %v705
          %722 = vst [vmem:[%s316 + $0x48] sm:$0xff] %v706
          %723 = vst [vmem:[%s316 + $0x50] sm:$0xff] %v707
          %724 = vst [vmem:[%s316 + $0x58] sm:$0xff] %v708
          %725 = vst [vmem:[%s316 + $0x60] sm:$0xff] %v709
          %726 = vst [vmem:[%s316 + $0x68] sm:$0xff] %v710
          %727 = vst [vmem:[%s316 + $0x70] sm:$0xff] %v711
          %728 = vst [vmem:[%s316 + $0x78] sm:$0xff] %v712
        $region56: #{tpu_custom_call.1} parent=35 // pred_fallthru
          _
        %s729 = sand.u32 %s157, 1
        %s730 = scalar_lea.sflag [#allocation5], %s729
        %s731 = sand.u32 %s157, 1
        %s732 = smul.addr %s731, 128
        %s733 = scalar_lea.vmem [#allocation9], %s732
        // Predicated region
        $region57: #{tpu_custom_call.1} parent=35 // pred_check
          %p734 = pneg %p167
        $region58: #{tpu_custom_call.1} parent=35 // pred_check_branch
          %736 = sbr.rel (%p734) target = $region60
        $region59: #{tpu_custom_call.1} parent=35 // pred_region
          %s737 = smul.u32 16, %s27
          %739 = vsyncadd %s730, 0
          %s740 = sadd.s32 %s28, %s737
          %s741 = smul.addr %s740, 8
          %s742 = scalar_lea.hbm %s4, %s741
          %s743 = sshll.u32 %s733, 4
          %s744 = int_to_ptr.vmem [resolvable:$true] %s743
          %s745 = sshll.u32 %s742, 4
          %s746 = int_to_ptr.hbm [resolvable:$true] %s745
          %751 = dma.vmem_to_hbm [thread:$0]  %s744, 2048, %s746, %s730, 128, 128, 8
        $region60: #{tpu_custom_call.1} parent=35 // pred_fallthru
          _
      $region36: #{tpu_custom_call.1} parent=5 // pred_fallthru
        _
      %p752 = scmp.le.s32.totalorder 2, %s17
      // Predicated region
      $region61: #{tpu_custom_call.1} parent=5 // pred_check
        %p753 = pneg %p752
      $region62: #{tpu_custom_call.1} parent=5 // pred_check_branch
        %755 = sbr.rel (%p753) target = $region64
      $region63: #{tpu_custom_call.1} parent=5 // pred_region
        %s756 = ssub.s32 %s17, 2
        // Predicated region
        $region65: #{tpu_custom_call.1} parent=63 // pred_check
          %p757 = pneg %p173
        $region66: #{tpu_custom_call.1} parent=63 // pred_check_branch
          %759 = sbr.rel (%p757) target = $region68
        $region67: #{tpu_custom_call.1} parent=63 // pred_region
          %s760 = sand.u32 %s158, 1
          %s761 = scalar_lea.sflag [#allocation5], %s760
          %s762 = sand.u32 %s158, 1
          %s763 = smul.addr %s762, 128
          %s764 = scalar_lea.vmem [#allocation9], %s763
          %766 = dma.done %s761, 2048
        $region68: #{tpu_custom_call.1} parent=63 // pred_fallthru
          _
      $region64: #{tpu_custom_call.1} parent=5 // pred_fallthru
        _
    $region6: #{tpu_custom_call.1} parent=1 // loop_footer
      %s21 = sadd.s32 1, %s17
    $region7: #{tpu_custom_call.1} parent=1 // loop_footer_branch
      %16 = sbr.rel target = $region3
    $region8: #{tpu_custom_call.1} parent=1 // loop_exit
      _
    %767 = vsyncpa [#allocation4], 1
    %s768 = scalar_lea.sflag [#allocation4], 1
    %769 = vsyncpa %s768, 1
    %770 = vsyncpa [#allocation7], 1
    %771 = vsyncpa [#allocation5], 1
    %s772 = scalar_lea.sflag [#allocation5], 1
    %773 = vsyncpa %s772, 1

</llo_original>
